<compile_context>
chip_gen: v6e
topology: v6e:2x2x1
jax: 0.10.0
libtpu: 0.0.40
codegen_flags: <defaults>
</compile_context>

<pallas_src>
import functools

import jax
import jax.numpy as jnp
from jax.experimental import pallas as pl
from jax.experimental.pallas import tpu as pltpu


def _round_up(x, m):
    return ((x + m - 1) // m) * m


def _cdiv(a, b):
    return (a + b - 1) // b


def _fused_mlp_kernel(*refs, num_layers):
    # refs = (x_ref, w0_ref, s0_ref, w1_ref, s1_ref, ..., o_ref)
    x_ref = refs[0]
    o_ref = refs[-1]
    layer_refs = refs[1:-1]

    h = x_ref[...]
    for i in range(num_layers):
        w_ref = layer_refs[2 * i]
        s_ref = layer_refs[2 * i + 1]
        # bf16 inputs, f32 accumulation on the MXU.
        h = jnp.dot(h.astype(w_ref.dtype), w_ref[...],
                    preferred_element_type=jnp.float32)
        h = h + s_ref[...]                       # folded bias*scale + BN shift (f32)
        if i < num_layers - 1:
            h = jnp.maximum(h, 0.0)              # ReLU activation
        # TODO(synk): nn.Dropout skipped (eval mode / p=0 -> identity).
    o_ref[...] = h.astype(o_ref.dtype)


def _fold_and_pad_params(params, compute_dtype):
    """Fold eval-mode BN into weights/shifts and pad feature dims to x128."""
    ws, shifts, widths = [], [], []
    for i, layer in enumerate(params):
        w = layer["w"] * layer["scale"][None, :]               # (in, out)
        s = layer["b"] * layer["scale"] + layer["shift"]       # (out,)
        in_dim, out_dim = w.shape
        out_pad = _round_up(out_dim, 128)
        in_pad = in_dim if i == 0 else widths[i - 1]           # match prev layer's padded width
        w = jnp.pad(w, ((0, in_pad - in_dim), (0, out_pad - out_dim)))
        s = jnp.pad(s, (0, out_pad - out_dim)).reshape(1, out_pad)
        ws.append(w.astype(compute_dtype))
        shifts.append(s.astype(jnp.float32))
        widths.append(out_pad)
    return ws, shifts, widths


def _pick_row_tile(M, K_in, widths, x_bytes, out_bytes, weight_bytes, vmem_capacity):
    """Largest row tile whose working set fits in ~half of scoped VMEM."""
    budget = vmem_capacity // 2
    avail = max(budget - weight_bytes, 1 << 20)
    n_out_pad = widths[-1]
    wmax = max(widths)
    per_row = 2 * K_in * x_bytes          # double-buffered x tile
    per_row += 2 * n_out_pad * out_bytes  # double-buffered out tile
    per_row += 4 * wmax                   # f32 intermediate slab
    per_row += 2 * wmax                   # bf16 cast copy of intermediate
    tm = avail // per_row
    tm = max(256, min(8192, (tm // 256) * 256))
    tm = min(tm, max(128, _round_up(M, 128)))                 # don't exceed problem size
    if M > 128:
        # keep >= 2 grid steps so the parallel axis can shard across both
        # TensorCores on v7x (negligible cost on single-TC v5e/v6e).
        tm = min(tm, max(128, _round_up(_cdiv(M, 2), 128)))
    return tm


def mlp_egc_forward(feats, params, *, compute_dtype=jnp.bfloat16, tm=None):
    """Fused MLP forward: one pallas_call over row tiles of `feats`."""
    num_layers = len(params)
    M, K0 = feats.shape
    N_out = params[-1]["w"].shape[1]

    ws, shifts, widths = _fold_and_pad_params(params, compute_dtype)
    n_out_pad = widths[-1]

    x = feats.astype(compute_dtype)       # halve the dominant HBM read stream
    x_bytes = x.dtype.itemsize
    out_bytes = 4
    weight_bytes = (sum(w.size * w.dtype.itemsize for w in ws)
                    + sum(s.size * 4 for s in shifts))

    try:
        vmem_capacity = int(pltpu.get_tpu_info().vmem_capacity_bytes)
    except Exception:
        vmem_capacity = 64 << 20          # conservative (v7x per-TC) fallback

    if tm is None:
        tm_eff = _pick_row_tile(M, K0, widths, x_bytes, out_bytes,
                                2 * weight_bytes, vmem_capacity)
    else:
        tm_eff = min(max(128, (tm // 128) * 128), max(128, _round_up(M, 128)))

    # No host padding of feats: Pallas clips the ragged last row-tile.
    grid = _cdiv(M, tm_eff)

    in_specs = [pl.BlockSpec((tm_eff, K0), lambda i: (i, 0))]   # x row tile
    operands = [x]
    for w, s in zip(ws, shifts):
        # Constant index_map -> parameters stay VMEM-resident across the grid.
        # (pl.Buffered(1) single-buffering skipped: weights are KiB-scale here.)
        in_specs.append(pl.BlockSpec(w.shape, lambda i: (0, 0)))
        in_specs.append(pl.BlockSpec(s.shape, lambda i: (0, 0)))
        operands.append(w)
        operands.append(s)

    kernel = functools.partial(_fused_mlp_kernel, num_layers=num_layers)

    # Advisory cost estimate for XLA's scheduler.
    flops = 0
    d_prev = K0
    for d in widths:
        flops += 2 * M * d_prev * d
        d_prev = d
    cost = pl.CostEstimate(
        flops=int(flops),
        transcendentals=0,
        bytes_accessed=int(M * K0 * x_bytes + M * n_out_pad * out_bytes
                           + weight_bytes),
    )

    vmem_limit = int(min(vmem_capacity, 128 << 20) * 3 // 4)

    out = pl.pallas_call(
        kernel,
        out_shape=jax.ShapeDtypeStruct((M, n_out_pad), jnp.float32),
        grid_spec=pltpu.PrefetchScalarGridSpec(
            num_scalar_prefetch=0,
            grid=(grid,),
            in_specs=in_specs,
            out_specs=pl.BlockSpec((tm_eff, n_out_pad), lambda i: (i, 0)),
        ),
        compiler_params=pltpu.CompilerParams(
            dimension_semantics=("parallel",),
            vmem_limit_bytes=vmem_limit),
        cost_estimate=cost,
    )(*operands)

    if n_out_pad != N_out:
        out = out[:, :N_out]              # drop lane-padding columns (zeros)
    return out


def init_mlp_egc_params(key, layers):
    """Deterministic synthetic parameters matching nn.Linear / nn.BatchNorm1d shapes."""
    num_layers = len(layers) - 1
    params = []
    for i in range(num_layers):
        in_dim, out_dim = layers[i], layers[i + 1]
        key, kw, kb, kg, kbeta, km, kv = jax.random.split(key, 7)
        # nn.Linear: weight (out, in), bias (out,)
        w_pt = jax.random.normal(kw, (out_dim, in_dim), jnp.float32) * 0.05
        b_pt = jax.random.normal(kb, (out_dim,), jnp.float32) * 0.05
        layer = {
            "w": w_pt.T,            # (in, out) so kernel computes x @ W
            "b": b_pt,
        }
        if i < num_layers - 1:
            # nn.BatchNorm1d(out_dim) eval mode: gamma, beta, running stats.
            gamma = 1.0 + 0.1 * jax.random.normal(kg, (out_dim,), jnp.float32)
            beta = 0.1 * jax.random.normal(kbeta, (out_dim,), jnp.float32)
            r_mean = 0.1 * jax.random.normal(km, (out_dim,), jnp.float32)
            r_var = 1.0 + 0.1 * jax.random.uniform(kv, (out_dim,), jnp.float32)
            eps = 1e-5
            scale = gamma / jnp.sqrt(r_var + eps)
            shift = beta - r_mean * scale
            layer["scale"] = scale
            layer["shift"] = shift
        else:
            layer["scale"] = jnp.ones((out_dim,), jnp.float32)
            layer["shift"] = jnp.zeros((out_dim,), jnp.float32)
        params.append(layer)
    return params


def mlp_egc_reference(feats, params, compute_dtype=jnp.float32):
    """Pure-JAX reference (original op order). compute_dtype mimics the kernel's streaming dtype."""
    num_layers = len(params)
    h = feats
    for i, layer in enumerate(params):
        w = (layer["w"] * layer["scale"][None, :]).astype(compute_dtype)
        s = layer["b"] * layer["scale"] + layer["shift"]
        y = jnp.dot(h.astype(compute_dtype), w,
                    preferred_element_type=jnp.float32) + s
        if i < num_layers - 1:
            y = jnp.maximum(y, 0.0)
        h = y
    return h


if __name__ == "__main__":
    key = jax.random.PRNGKey(0)
    key, kx = jax.random.split(key)

    # Small ogbn-arxiv-like MLP: layers = [in_dim, hidden, out_dim]
    layers = [32, 64, 40]
    n_nodes = 200                 # NOT a multiple of the tile -> ragged last block

    feats = jax.random.normal(kx, (n_nodes, layers[0]), jnp.float32)
    params = init_mlp_egc_params(key, layers)

    out = mlp_egc_forward(feats, params)
    out = jax.block_until_ready(out)

    ref_bf16 = mlp_egc_reference(feats, params, compute_dtype=jnp.bfloat16)
    ref_f32 = mlp_egc_reference(feats, params, compute_dtype=jnp.float32)

    assert out.shape == (n_nodes, layers[-1])
    assert jnp.allclose(out, ref_bf16, atol=1e-2, rtol=1e-2), \
        "mismatch vs bf16-matched reference"
    assert jnp.allclose(out, ref_f32, atol=5e-2, rtol=5e-2), \
        "mismatch vs f32 reference"

    print("KERNEL_OK")
</pallas_src>

<mosaic_0001>
module attributes {stable_mosaic.version = 11 : i64} {
  func.func @_fused_mlp_kernel(%arg0: i32, %arg1: memref<128x32xbf16, #tpu.memory_space<vmem>>, %arg2: memref<32x128xbf16, #tpu.memory_space<vmem>>, %arg3: memref<1x128xf32, #tpu.memory_space<vmem>>, %arg4: memref<128x128xbf16, #tpu.memory_space<vmem>>, %arg5: memref<1x128xf32, #tpu.memory_space<vmem>>, %arg6: memref<128x128xf32, #tpu.memory_space<vmem>>) attributes {dimension_semantics = [#tpu.dimension_semantics<parallel>], iteration_bounds = array<i64: 2>, scalar_prefetch = 0 : i64, scratch_operands = 0 : i64, tpu.core_type = #tpu.core_type<tc>, window_params = [{transform_indices = @transform_0, window_bounds = array<i64: 128, 32>}, {pipeline_mode = #tpu.pipeline_mode<synchronous>, transform_indices = @transform_1, window_bounds = array<i64: 32, 128>}, {pipeline_mode = #tpu.pipeline_mode<synchronous>, transform_indices = @transform_2, window_bounds = array<i64: 1, 128>}, {pipeline_mode = #tpu.pipeline_mode<synchronous>, transform_indices = @transform_3, window_bounds = array<i64: 128, 128>}, {pipeline_mode = #tpu.pipeline_mode<synchronous>, transform_indices = @transform_4, window_bounds = array<i64: 1, 128>}, {transform_indices = @transform_5, window_bounds = array<i64: 128, 128>}]} {
    %c0 = arith.constant 0 : index
    %c0_0 = arith.constant 0 : index
    %0 = vector.load %arg1[%c0, %c0_0] : memref<128x32xbf16, #tpu.memory_space<vmem>>, vector<128x32xbf16>
    %c0_1 = arith.constant 0 : index
    %c0_2 = arith.constant 0 : index
    %1 = vector.load %arg2[%c0_1, %c0_2] : memref<32x128xbf16, #tpu.memory_space<vmem>>, vector<32x128xbf16>
    %cst = arith.constant dense<0.000000e+00> : vector<128x128xf32>
    %2 = tpu.matmul %0, %1, %cst {dimension_numbers = #tpu.dot_dimension_numbers<[1], [0], [0], [1], [0, 0, 1, 1], [], []>} : vector<128x32xbf16>, vector<32x128xbf16>, vector<128x128xf32> -> vector<128x128xf32>
    %c0_3 = arith.constant 0 : index
    %c0_4 = arith.constant 0 : index
    %3 = vector.load %arg3[%c0_3, %c0_4] : memref<1x128xf32, #tpu.memory_space<vmem>>, vector<1x128xf32>
    %4 = vector.broadcast %3 : vector<1x128xf32> to vector<128x128xf32>
    %5 = arith.addf %2, %4 : vector<128x128xf32>
    %cst_5 = arith.constant 0.000000e+00 : f32
    %6 = vector.broadcast %cst_5 : f32 to vector<128x128xf32>
    %7 = arith.maximumf %5, %6 : vector<128x128xf32>
    %8 = arith.truncf %7 : vector<128x128xf32> to vector<128x128xbf16>
    %c0_6 = arith.constant 0 : index
    %c0_7 = arith.constant 0 : index
    %9 = vector.load %arg4[%c0_6, %c0_7] : memref<128x128xbf16, #tpu.memory_space<vmem>>, vector<128x128xbf16>
    %cst_8 = arith.constant dense<0.000000e+00> : vector<128x128xf32>
    %10 = tpu.matmul %8, %9, %cst_8 {dimension_numbers = #tpu.dot_dimension_numbers<[1], [0], [0], [1], [0, 0, 1, 1], [], []>} : vector<128x128xbf16>, vector<128x128xbf16>, vector<128x128xf32> -> vector<128x128xf32>
    %c0_9 = arith.constant 0 : index
    %c0_10 = arith.constant 0 : index
    %11 = vector.load %arg5[%c0_9, %c0_10] : memref<1x128xf32, #tpu.memory_space<vmem>>, vector<1x128xf32>
    %12 = vector.broadcast %11 : vector<1x128xf32> to vector<128x128xf32>
    %13 = arith.addf %10, %12 : vector<128x128xf32>
    %c0_11 = arith.constant 0 : index
    %c0_12 = arith.constant 0 : index
    %14 = vector.load %arg6[%c0_11, %c0_12] : memref<128x128xf32, #tpu.memory_space<vmem>>, vector<128x128xf32>
    tpu.vector_store %arg6[%c0_11, %c0_12], %13 {strides = array<i32>} : memref<128x128xf32, #tpu.memory_space<vmem>>, vector<128x128xf32>,
    return
  }
  func.func @transform_0(%arg0: i32) -> (i32, i32) {
    %c0_i32 = arith.constant 0 : i32
    %c0_i32_0 = arith.constant 0 : i32
    return %arg0, %c0_i32 : i32, i32
  }
  func.func @transform_1(%arg0: i32) -> (i32, i32) {
    %c0_i32 = arith.constant 0 : i32
    %c0_i32_0 = arith.constant 0 : i32
    %c0_i32_1 = arith.constant 0 : i32
    return %c0_i32, %c0_i32_0 : i32, i32
  }
  func.func @transform_2(%arg0: i32) -> (i32, i32) {
    %c0_i32 = arith.constant 0 : i32
    %c0_i32_0 = arith.constant 0 : i32
    %c0_i32_1 = arith.constant 0 : i32
    return %c0_i32, %c0_i32_0 : i32, i32
  }
  func.func @transform_3(%arg0: i32) -> (i32, i32) {
    %c0_i32 = arith.constant 0 : i32
    %c0_i32_0 = arith.constant 0 : i32
    %c0_i32_1 = arith.constant 0 : i32
    return %c0_i32, %c0_i32_0 : i32, i32
  }
  func.func @transform_4(%arg0: i32) -> (i32, i32) {
    %c0_i32 = arith.constant 0 : i32
    %c0_i32_0 = arith.constant 0 : i32
    %c0_i32_1 = arith.constant 0 : i32
    return %c0_i32, %c0_i32_0 : i32, i32
  }
  func.func @transform_5(%arg0: i32) -> (i32, i32) {
    %c0_i32 = arith.constant 0 : i32
    %c0_i32_0 = arith.constant 0 : i32
    return %arg0, %c0_i32 : i32, i32
  }
}

</mosaic_0001>

<llo_original>
// kernel: tpu_custom_call.1
$region0: #{tpu_custom_call.1}
  #allocation0 [shape = 'u32[]', space=smem, size = 0x4, offset = 0x4, fixed_abs, tag = 'smem constant byte address 0x4 - core index']
  #allocation1 [shape = 'u32[144,128]{1,0:T(1,128)}', space=vmem, size = 0x12000, scoped, tag = 'internal scratch']
  %s0 = inlined_call_operand.vmem [shape: bf16[200,32], index: 0, kind: input, shape index: {}]
  %s1 = inlined_call_operand.vmem [shape: bf16[32,128], index: 1, kind: input, shape index: {}]
  %s2 = inlined_call_operand.vmem [shape: f32[1,128], index: 2, kind: input, shape index: {}]
  %s3 = inlined_call_operand.vmem [shape: bf16[128,128], index: 3, kind: input, shape index: {}]
  %s4 = inlined_call_operand.vmem [shape: f32[1,128], index: 4, kind: input, shape index: {}]
  %s5 = inlined_call_operand.hbm [shape: f32[200,128], index: 5, kind: output, shape index: {}]
  %s6 = sld [smem:[#allocation0]]
  $region53: #{tpu_custom_call.1} parent=0
    _
  %s8 = ssub.s32 1, %s6
  %s9 = scalar_select 0, %s8, %s6
  $region1: #{tpu_custom_call.1} parent=0
    #allocation2 [shape = 'u8[131072]{0}', space=vmem, size = 0x20000, scoped, tag = 'output window, operand 0']
    #allocation3 [shape = 's32[2]{0}', space=sflag, size = 0x8, scoped, tag = 'scoped memory for tpu_custom_call.1']
    %10 = vsyncpa [#allocation3], 0
    %s11 = scalar_lea.sflag [#allocation3], 1
    %12 = vsyncpa %s11, 0
    loop: start=0, step=1, limit=4
    $region2: #{tpu_custom_call.1} parent=1 // loop_pre_header
      _
    $region3: #{tpu_custom_call.1} parent=1 // loop_header
      %s14 = sphi 0, %s18
      %p15 = scmp.ge.s32.totalorder %s14, 4
      %s24 = sphi 0, %s26
      %s27 = sphi 0, %s24
      %s28 = sphi 0, %s27
      %s44 = sphi 0, %s28
      %s48 = sphi 0, %s48
      %s50 = sphi 0, %s48
      %s51 = sphi 0, %s50
      %s65 = sphi 0, %s51
      %s69 = sphi 0, %s69
      %s71 = sphi 0, %s69
      %s72 = sphi 0, %s71
      %s86 = sphi 0, %s72
      %s90 = sphi 0, %s90
      %s92 = sphi 0, %s90
      %s93 = sphi 0, %s92
      %s107 = sphi 0, %s93
      %s111 = sphi 0, %s111
      %s113 = sphi 0, %s111
      %s114 = sphi 0, %s113
      %s128 = sphi 0, %s114
      %s134 = sphi 0, %s136
      %s137 = sphi 0, %s134
      %s138 = sphi 0, %s137
      %s154 = sphi 0, %s138
    $region4: #{tpu_custom_call.1} parent=1 // loop_header_branch
      %17 = sbr.rel (%p15) target = $region8
    $region5: #{tpu_custom_call.1} parent=1 // loop_body
      %s19 = ssub.s32 %s14, 1
      %s20 = ssub.s32 %s14, 2
      %s21 = sadd.s32 %s14, 1
      %s22 = ssub.s32 %s14, %s21
      %p23 = scmp.eq.s32.totalorder %s22, 0
      %s25 = sadd.s32 %s24, 1
      %s26 = scalar_select %p23, %s24, %s25
      %p29 = pneg %p23
      %p30 = scmp.eq.s32.totalorder %s14, 1
      %p31 = por %p29, %p30
      %p32 = scmp.ne.s32.totalorder %s24, %s27
      %p33 = scmp.eq.s32.totalorder %s14, 0
      %p34 = por %p32, %p33
      %p35 = scmp.ne.s32.totalorder %s24, %s27
      %p36 = scmp.eq.s32.totalorder %s19, 1
      %p37 = por %p35, %p36
      %p38 = scmp.ne.s32.totalorder %s27, %s28
      %p39 = scmp.eq.s32.totalorder %s19, 0
      %p40 = por %p38, %p39
      %p41 = scmp.ne.s32.totalorder %s27, %s28
      %p42 = scmp.eq.s32.totalorder %s20, 1
      %p43 = por %p41, %p42
      %p45 = scmp.ne.s32.totalorder %s28, %s44
      %p46 = scmp.eq.s32.totalorder %s20, 0
      %p47 = por %p45, %p46
      %s49 = sadd.s32 %s48, 1
      %p52 = scmp.eq.s32.totalorder %s14, 1
      %p53 = scmp.ne.s32.totalorder %s48, %s50
      %p54 = scmp.eq.s32.totalorder %s14, 0
      %p55 = por %p53, %p54
      %p56 = scmp.ne.s32.totalorder %s48, %s50
      %p57 = scmp.eq.s32.totalorder %s19, 1
      %p58 = por %p56, %p57
      %p59 = scmp.ne.s32.totalorder %s50, %s51
      %p60 = scmp.eq.s32.totalorder %s19, 0
      %p61 = por %p59, %p60
      %p62 = scmp.ne.s32.totalorder %s50, %s51
      %p63 = scmp.eq.s32.totalorder %s20, 1
      %p64 = por %p62, %p63
      %p66 = scmp.ne.s32.totalorder %s51, %s65
      %p67 = scmp.eq.s32.totalorder %s20, 0
      %p68 = por %p66, %p67
      %s70 = sadd.s32 %s69, 1
      %p73 = scmp.eq.s32.totalorder %s14, 1
      %p74 = scmp.ne.s32.totalorder %s69, %s71
      %p75 = scmp.eq.s32.totalorder %s14, 0
      %p76 = por %p74, %p75
      %p77 = scmp.ne.s32.totalorder %s69, %s71
      %p78 = scmp.eq.s32.totalorder %s19, 1
      %p79 = por %p77, %p78
      %p80 = scmp.ne.s32.totalorder %s71, %s72
      %p81 = scmp.eq.s32.totalorder %s19, 0
      %p82 = por %p80, %p81
      %p83 = scmp.ne.s32.totalorder %s71, %s72
      %p84 = scmp.eq.s32.totalorder %s20, 1
      %p85 = por %p83, %p84
      %p87 = scmp.ne.s32.totalorder %s72, %s86
      %p88 = scmp.eq.s32.totalorder %s20, 0
      %p89 = por %p87, %p88
      %s91 = sadd.s32 %s90, 1
      %p94 = scmp.eq.s32.totalorder %s14, 1
      %p95 = scmp.ne.s32.totalorder %s90, %s92
      %p96 = scmp.eq.s32.totalorder %s14, 0
      %p97 = por %p95, %p96
      %p98 = scmp.ne.s32.totalorder %s90, %s92
      %p99 = scmp.eq.s32.totalorder %s19, 1
      %p100 = por %p98, %p99
      %p101 = scmp.ne.s32.totalorder %s92, %s93
      %p102 = scmp.eq.s32.totalorder %s19, 0
      %p103 = por %p101, %p102
      %p104 = scmp.ne.s32.totalorder %s92, %s93
      %p105 = scmp.eq.s32.totalorder %s20, 1
      %p106 = por %p104, %p105
      %p108 = scmp.ne.s32.totalorder %s93, %s107
      %p109 = scmp.eq.s32.totalorder %s20, 0
      %p110 = por %p108, %p109
      %s112 = sadd.s32 %s111, 1
      %p115 = scmp.eq.s32.totalorder %s14, 1
      %p116 = scmp.ne.s32.totalorder %s111, %s113
      %p117 = scmp.eq.s32.totalorder %s14, 0
      %p118 = por %p116, %p117
      %p119 = scmp.ne.s32.totalorder %s111, %s113
      %p120 = scmp.eq.s32.totalorder %s19, 1
      %p121 = por %p119, %p120
      %p122 = scmp.ne.s32.totalorder %s113, %s114
      %p123 = scmp.eq.s32.totalorder %s19, 0
      %p124 = por %p122, %p123
      %p125 = scmp.ne.s32.totalorder %s113, %s114
      %p126 = scmp.eq.s32.totalorder %s20, 1
      %p127 = por %p125, %p126
      %p129 = scmp.ne.s32.totalorder %s114, %s128
      %p130 = scmp.eq.s32.totalorder %s20, 0
      %p131 = por %p129, %p130
      %s132 = ssub.s32 %s14, %s21
      %p133 = scmp.eq.s32.totalorder %s132, 0
      %s135 = sadd.s32 %s134, 1
      %s136 = scalar_select %p133, %s134, %s135
      %p139 = pneg %p133
      %p140 = scmp.eq.s32.totalorder %s14, 1
      %p141 = por %p139, %p140
      %p142 = scmp.ne.s32.totalorder %s134, %s137
      %p143 = scmp.eq.s32.totalorder %s14, 0
      %p144 = por %p142, %p143
      %p145 = scmp.ne.s32.totalorder %s134, %s137
      %p146 = scmp.eq.s32.totalorder %s19, 1
      %p147 = por %p145, %p146
      %p148 = scmp.ne.s32.totalorder %s137, %s138
      %p149 = scmp.eq.s32.totalorder %s19, 0
      %p150 = por %p148, %p149
      %p151 = scmp.ne.s32.totalorder %s137, %s138
      %p152 = scmp.eq.s32.totalorder %s20, 1
      %p153 = por %p151, %p152
      %p155 = scmp.ne.s32.totalorder %s138, %s154
      %p156 = scmp.eq.s32.totalorder %s20, 0
      %p157 = por %p155, %p156
      %p158 = scmp.le.s32.totalorder 1, %s14
      %p159 = scmp.lt.s32.totalorder %s14, 3
      %p160 = pnand %p158, %p159
      %p161 = pneg %p160
      // Predicated region
      $region9: #{tpu_custom_call.1} parent=5 // pred_check
        _
      $region10: #{tpu_custom_call.1} parent=5 // pred_check_branch
        %163 = sbr.rel (%p160) target = $region12
      $region11: #{tpu_custom_call.1} parent=5 // pred_region
        %s164 = ssub.s32 %s14, 1
        // Predicated region
        $region13: #{tpu_custom_call.1} parent=11 // pred_check
          %p165 = pneg %p61
        $region14: #{tpu_custom_call.1} parent=11 // pred_check_branch
          %167 = sbr.rel (%p165) target = $region16
        $region15: #{tpu_custom_call.1} parent=11 // pred_region
          _
        $region16: #{tpu_custom_call.1} parent=11 // pred_fallthru
          _
        // Predicated region
        $region17: #{tpu_custom_call.1} parent=11 // pred_check
          %p168 = pneg %p82
        $region18: #{tpu_custom_call.1} parent=11 // pred_check_branch
          %170 = sbr.rel (%p168) target = $region20
        $region19: #{tpu_custom_call.1} parent=11 // pred_region
          _
        $region20: #{tpu_custom_call.1} parent=11 // pred_fallthru
          _
        // Predicated region
        $region21: #{tpu_custom_call.1} parent=11 // pred_check
          %p171 = pneg %p103
        $region22: #{tpu_custom_call.1} parent=11 // pred_check_branch
          %173 = sbr.rel (%p171) target = $region24
        $region23: #{tpu_custom_call.1} parent=11 // pred_region
          _
        $region24: #{tpu_custom_call.1} parent=11 // pred_fallthru
          _
        // Predicated region
        $region25: #{tpu_custom_call.1} parent=11 // pred_check
          %p174 = pneg %p124
        $region26: #{tpu_custom_call.1} parent=11 // pred_check_branch
          %176 = sbr.rel (%p174) target = $region28
        $region27: #{tpu_custom_call.1} parent=11 // pred_region
          _
        $region28: #{tpu_custom_call.1} parent=11 // pred_fallthru
          _
      $region12: #{tpu_custom_call.1} parent=5 // pred_fallthru
        _
      %p177 = scmp.lt.s32.totalorder %s14, 2
      // Predicated region
      $region29: #{tpu_custom_call.1} parent=5 // pred_check
        %p178 = pneg %p177
      $region30: #{tpu_custom_call.1} parent=5 // pred_check_branch
        %180 = sbr.rel (%p178) target = $region32
      $region31: #{tpu_custom_call.1} parent=5 // pred_region
        // Predicated region
        $region33: #{tpu_custom_call.1} parent=31 // pred_check
          %p181 = pneg %p34
        $region34: #{tpu_custom_call.1} parent=31 // pred_check_branch
          %183 = sbr.rel (%p181) target = $region36
        $region35: #{tpu_custom_call.1} parent=31 // pred_region
          %s184 = smul.u32 16, %s14
          %s185 = ssub.s32 25, %s184
          %p186 = scmp.lt.s32.totalorder %s185, 16
          %s187 = scalar_select %p186, %s185, 16
          %s188 = smul.u32 64, %s187
          %p189 = scmp.lt.s32.totalorder %s184, 24
          %s190 = scalar_select %p189, %s184, 24
          %s191 = smul.addr %s190, 4
          %s192 = scalar_lea.vmem %s0, %s191
          %s193 = smul.u32 16, %s14
          %s194 = ssub.s32 25, %s193
          %p195 = scmp.lt.s32.totalorder %s194, 16
          %s196 = scalar_select %p195, %s194, 16
          %s197 = smul.u32 64, %s196
        $region36: #{tpu_custom_call.1} parent=31 // pred_fallthru
          _
      $region32: #{tpu_custom_call.1} parent=5 // pred_fallthru
        _
      %p198 = scmp.le.s32.totalorder 1, %s14
      %p199 = scmp.lt.s32.totalorder %s14, 3
      %p200 = pnand %p198, %p199
      %p201 = pneg %p200
      // Predicated region
      $region37: #{tpu_custom_call.1} parent=5 // pred_check
        _
      $region38: #{tpu_custom_call.1} parent=5 // pred_check_branch
        %203 = sbr.rel (%p200) target = $region40
      $region39: #{tpu_custom_call.1} parent=5 // pred_region
        %s204 = ssub.s32 %s14, 1
        %s205 = smul.u32 16, %s19
        %s206 = ssub.s32 25, %s205
        %p207 = scmp.lt.s32.totalorder %s206, 16
        %s208 = scalar_select %p207, %s206, 16
        %s209 = smul.u32 64, %s208
        %p210 = scmp.lt.s32.totalorder %s205, 24
        %s211 = scalar_select %p210, %s205, 24
        %s212 = smul.addr %s211, 4
        %s213 = scalar_lea.vmem %s0, %s212
        %p214 = pneg %p40
        %p215 = pneg %p37
        %p216 = pneg %p61
        %p217 = pneg %p58
        %p218 = pneg %p82
        %p219 = pneg %p79
        %p220 = pneg %p103
        %p221 = pneg %p100
        %p222 = pneg %p124
        %p223 = pneg %p121
        %p224 = pneg %p150
        %p225 = pneg %p147
        %s226 = sand.u32 %s137, 1
        %s227 = scalar_lea.sflag [#allocation3], %s226
        %s228 = sand.u32 %s137, 1
        %s229 = smul.addr %s228, 128
        %s230 = scalar_lea.vmem [#allocation2], %s229
        %s231 = smul.u32 16, %s19
        %s232 = ssub.s32 25, %s231
        %p233 = scmp.lt.s32.totalorder %s232, 16
        %s234 = scalar_select %p233, %s232, 16
        %s235 = smul.u32 64, %s234
        %p236 = scmp.lt.s32.totalorder %s231, 24
        %s237 = scalar_select %p236, %s231, 24
        %s238 = smul.addr %s237, 4
        %s239 = scalar_lea.vmem %s0, %s238
        %s240 = smul.u32 16, %s19
        %s241 = ssub.s32 25, %s240
        %p242 = scmp.lt.s32.totalorder %s241, 16
        %s243 = scalar_select %p242, %s241, 16
        %s244 = smul.u32 64, %s243
        %s245 = smul.u32 16, %s19
        %s246 = ssub.s32 25, %s245
        %p247 = scmp.lt.s32.totalorder %s246, 16
        %s248 = scalar_select %p247, %s246, 16
        %s249 = smul.u32 128, %s248
        %v251 = vld [vmem:[%s239] sm:$0xf]
        %v252 = vld [vmem:[%s239 + $0x4] sm:$0xf]
        %v253 = vld [vmem:[%s239 + $0x8] sm:$0xf]
        %v254 = vld [vmem:[%s239 + $0xc] sm:$0xf]
        %v255 = vld [vmem:[%s239 + $0x10] sm:$0xf]
        %v256 = vld [vmem:[%s239 + $0x14] sm:$0xf]
        %v257 = vld [vmem:[%s239 + $0x18] sm:$0xf]
        %v258 = vld [vmem:[%s239 + $0x1c] sm:$0xf]
        %v259 = vld [vmem:[%s239 + $0x20] sm:$0xf]
        %v260 = vld [vmem:[%s239 + $0x24] sm:$0xf]
        %v261 = vld [vmem:[%s239 + $0x28] sm:$0xf]
        %v262 = vld [vmem:[%s239 + $0x2c] sm:$0xf]
        %v263 = vld [vmem:[%s239 + $0x30] sm:$0xf]
        %v264 = vld [vmem:[%s239 + $0x34] sm:$0xf]
        %v265 = vld [vmem:[%s239 + $0x38] sm:$0xf]
        %v266 = vld [vmem:[%s239 + $0x3c] sm:$0xf]
        %v267 = vld [vmem:[%s1] sm:$0xf]
        %v268 = vld [vmem:[%s1 + $0x4] sm:$0xf]
        %v269 = vld [vmem:[%s1 + $0x8] sm:$0xf]
        %v270 = vld [vmem:[%s1 + $0xc] sm:$0xf]
        %v271 = vld [vmem:[%s2] sm:$0x1]
        %v273 = vlaneseq
        %v274 = vshrl.u32 %v273, 7
        %v275 = vsub.s32 0, %v274
        %v276 = vrot.slane %v271, %v275
        %v294 = vunpack.c.l.b16 %v251
        %v295 = vunpack.c.l.b16 %v252
        %v296 = vunpack.c.l.b16 %v253
        %v297 = vunpack.c.l.b16 %v254
        %v298 = vunpack.c.l.b16 %v255
        %v299 = vunpack.c.l.b16 %v256
        %v300 = vunpack.c.l.b16 %v257
        %v301 = vunpack.c.l.b16 %v258
        %v302 = vunpack.c.l.b16 %v259
        %v303 = vunpack.c.l.b16 %v260
        %v304 = vunpack.c.l.b16 %v261
        %v305 = vunpack.c.l.b16 %v262
        %v306 = vunpack.c.l.b16 %v263
        %v307 = vunpack.c.l.b16 %v264
        %v308 = vunpack.c.l.b16 %v265
        %v309 = vunpack.c.l.b16 %v266
        %v310 = vpack.c.b16 %v295, %v294
        %v311 = vpack.c.b16 %v297, %v296
        %v312 = vpack.c.b16 %v299, %v298
        %v313 = vpack.c.b16 %v301, %v300
        %v314 = vpack.c.b16 %v303, %v302
        %v315 = vpack.c.b16 %v305, %v304
        %v316 = vpack.c.b16 %v307, %v306
        %v317 = vpack.c.b16 %v309, %v308
        %v322 = vunpack.c.l.b16 %v267
        %v323 = vunpack.c.l.b16 %v268
        %v324 = vunpack.c.l.b16 %v269
        %v325 = vunpack.c.l.b16 %v270
        %v326 = vpack.c.b16 %v323, %v322
        %v327 = vpack.c.b16 %v325, %v324
        %vm330 = vcmask 261120
        %v332 = vsel %vm330, %v310, 0
        %v335 = vsel %vm330, %v311, 0
        %v338 = vsel %vm330, %v312, 0
        %v341 = vsel %vm330, %v313, 0
        %v344 = vsel %vm330, %v314, 0
        %v347 = vsel %vm330, %v315, 0
        %v350 = vsel %vm330, %v316, 0
        %v353 = vsel %vm330, %v317, 0
        %355 = vmatprep.subr.bf16.mxu0 0
        %356 = vmatpush1.bf16.msra.mxu0 0
        %357 = vmatprep.subr.bf16.mxu0 0
        %358 = vmatpush1.bf16.msra.mxu0 0
        %359 = vmatprep.subr.bf16.mxu0 0
        %360 = vmatpush1.bf16.msra.mxu0 0
        %361 = vmatprep.subr.bf16.mxu0 0
        %362 = vmatpush1.bf16.msra.mxu0 0
        %363 = vmatprep.subr.bf16.mxu0 0
        %364 = vmatpush1.bf16.msra.mxu0 0
        %365 = vmatprep.subr.bf16.mxu0 0
        %366 = vmatpush1.bf16.msra.mxu0 0
        %367 = vmatprep.subr.bf16.mxu0 0
        %368 = vmatpush1.bf16.msra.mxu0 %v327
        %369 = vmatprep.subr.bf16.mxu0 0
        %370 = vmatpush1.bf16.msra.mxu0 %v326
        %371 = vmatprep.subr.bf16.mxu0 0
        %372 = vmatpush2.bf16.msra.mxu0 0
        %373 = vmatprep.subr.bf16.mxu0 0
        %374 = vmatpush2.bf16.msra.mxu0 0
        %375 = vmatprep.subr.bf16.mxu0 0
        %376 = vmatpush2.bf16.msra.mxu0 0
        %377 = vmatprep.subr.bf16.mxu0 0
        %378 = vmatpush2.bf16.msra.mxu0 0
        %379 = vmatprep.subr.bf16.mxu0 0
        %380 = vmatpush2.bf16.msra.mxu0 0
        %381 = vmatprep.subr.bf16.mxu0 0
        %382 = vmatpush2.bf16.msra.mxu0 0
        %383 = vmatprep.subr.bf16.mxu0 0
        %384 = vmatpush2.bf16.msra.mxu0 0
        %385 = vmatprep.subr.bf16.mxu0 0
        %386 = vmatpush2.bf16.msra.mxu0 0
        %387 = vmatprep.mubr.bf16.mxu0 0
        %388 = vmatmul.mubr.bf16.gmra.mxu0 %v332
        %v389 = vpop.f32.mrf.mxu0
        %v390 = vadd.f32 %v276, %v389
        %v391 = vpop.f32.mrf.mxu0
        %v392 = vpop.f32.mrf.mxu0
        %v393 = vadd.f32 %v276, %v392
        %v394 = vpop.f32.mrf.mxu0
        %395 = vmatprep.mubr.bf16.mxu0 0
        %396 = vmatmul.mubr.bf16.gmra.mxu0 %v335
        %v397 = vpop.f32.mrf.mxu0
        %v398 = vadd.f32 %v276, %v397
        %v399 = vpop.f32.mrf.mxu0
        %v400 = vpop.f32.mrf.mxu0
        %v401 = vadd.f32 %v276, %v400
        %v402 = vpop.f32.mrf.mxu0
        %403 = vmatprep.mubr.bf16.mxu0 0
        %404 = vmatmul.mubr.bf16.gmra.mxu0 %v338
        %v405 = vpop.f32.mrf.mxu0
        %v406 = vadd.f32 %v276, %v405
        %v407 = vpop.f32.mrf.mxu0
        %v408 = vpop.f32.mrf.mxu0
        %v409 = vadd.f32 %v276, %v408
        %v410 = vpop.f32.mrf.mxu0
        %411 = vmatprep.mubr.bf16.mxu0 0
        %412 = vmatmul.mubr.bf16.gmra.mxu0 %v341
        %v413 = vpop.f32.mrf.mxu0
        %v414 = vadd.f32 %v276, %v413
        %v415 = vpop.f32.mrf.mxu0
        %v416 = vpop.f32.mrf.mxu0
        %v417 = vadd.f32 %v276, %v416
        %v418 = vpop.f32.mrf.mxu0
        %419 = vmatprep.mubr.bf16.mxu0 0
        %420 = vmatmul.mubr.bf16.gmra.mxu0 %v344
        %v421 = vpop.f32.mrf.mxu0
        %v422 = vadd.f32 %v276, %v421
        %v423 = vpop.f32.mrf.mxu0
        %v424 = vpop.f32.mrf.mxu0
        %v425 = vadd.f32 %v276, %v424
        %v426 = vpop.f32.mrf.mxu0
        %427 = vmatprep.mubr.bf16.mxu0 0
        %428 = vmatmul.mubr.bf16.gmra.mxu0 %v347
        %v429 = vpop.f32.mrf.mxu0
        %v430 = vadd.f32 %v276, %v429
        %v431 = vpop.f32.mrf.mxu0
        %v432 = vpop.f32.mrf.mxu0
        %v433 = vadd.f32 %v276, %v432
        %v434 = vpop.f32.mrf.mxu0
        %435 = vmatprep.mubr.bf16.mxu0 0
        %436 = vmatmul.mubr.bf16.gmra.mxu0 %v350
        %v437 = vpop.f32.mrf.mxu0
        %v438 = vadd.f32 %v276, %v437
        %v439 = vpop.f32.mrf.mxu0
        %v440 = vpop.f32.mrf.mxu0
        %v441 = vadd.f32 %v276, %v440
        %v442 = vpop.f32.mrf.mxu0
        %443 = vmatprep.mubr.bf16.mxu0 0
        %444 = vmatmul.mubr.bf16.gmra.mxu0 %v353
        %v445 = vpop.f32.mrf.mxu0
        %v446 = vadd.f32 %v276, %v445
        %v447 = vpop.f32.mrf.mxu0
        %v448 = vpop.f32.mrf.mxu0
        %v449 = vadd.f32 %v276, %v448
        %v450 = vpop.f32.mrf.mxu0
        %451 = vdwg.mxu0
        %v452 = vmax.f32 %v390, 0.0
        %v453 = vmax.f32 %v393, 0.0
        %v454 = vmax.f32 %v398, 0.0
        %v455 = vmax.f32 %v401, 0.0
        %v456 = vmax.f32 %v406, 0.0
        %v457 = vmax.f32 %v409, 0.0
        %v458 = vmax.f32 %v414, 0.0
        %v459 = vmax.f32 %v417, 0.0
        %v460 = vmax.f32 %v422, 0.0
        %v461 = vmax.f32 %v425, 0.0
        %v462 = vmax.f32 %v430, 0.0
        %v463 = vmax.f32 %v433, 0.0
        %v464 = vmax.f32 %v438, 0.0
        %v465 = vmax.f32 %v441, 0.0
        %v466 = vmax.f32 %v446, 0.0
        %v467 = vmax.f32 %v449, 0.0
        %v468 = vpack.c.bf16 %v453, %v452
        %v469 = vpack.c.bf16 %v455, %v454
        %v470 = vpack.c.bf16 %v457, %v456
        %v471 = vpack.c.bf16 %v459, %v458
        %v472 = vpack.c.bf16 %v461, %v460
        %v473 = vpack.c.bf16 %v463, %v462
        %v474 = vpack.c.bf16 %v465, %v464
        %v475 = vpack.c.bf16 %v467, %v466
        %v476 = vld [vmem:[%s3] sm:$0xf]
        %v477 = vld [vmem:[%s3 + $0x4] sm:$0xf]
        %v478 = vld [vmem:[%s3 + $0x8] sm:$0xf]
        %v479 = vld [vmem:[%s3 + $0xc] sm:$0xf]
        %v480 = vld [vmem:[%s3 + $0x10] sm:$0xf]
        %v481 = vld [vmem:[%s3 + $0x14] sm:$0xf]
        %v482 = vld [vmem:[%s3 + $0x18] sm:$0xf]
        %v483 = vld [vmem:[%s3 + $0x1c] sm:$0xf]
        %v484 = vld [vmem:[%s3 + $0x20] sm:$0xf]
        %v485 = vld [vmem:[%s3 + $0x24] sm:$0xf]
        %v486 = vld [vmem:[%s3 + $0x28] sm:$0xf]
        %v487 = vld [vmem:[%s3 + $0x2c] sm:$0xf]
        %v488 = vld [vmem:[%s3 + $0x30] sm:$0xf]
        %v489 = vld [vmem:[%s3 + $0x34] sm:$0xf]
        %v490 = vld [vmem:[%s3 + $0x38] sm:$0xf]
        %v491 = vld [vmem:[%s3 + $0x3c] sm:$0xf]
        %v492 = vld [vmem:[%s4] sm:$0x1]
        %v494 = vlaneseq
        %v495 = vshrl.u32 %v494, 7
        %v496 = vsub.s32 0, %v495
        %v497 = vrot.slane %v492, %v496
        %v515 = vunpack.c.l.b16 %v476
        %v516 = vunpack.c.l.b16 %v477
        %v517 = vunpack.c.l.b16 %v478
        %v518 = vunpack.c.l.b16 %v479
        %v519 = vunpack.c.l.b16 %v480
        %v520 = vunpack.c.l.b16 %v481
        %v521 = vunpack.c.l.b16 %v482
        %v522 = vunpack.c.l.b16 %v483
        %v523 = vunpack.c.l.b16 %v484
        %v524 = vunpack.c.l.b16 %v485
        %v525 = vunpack.c.l.b16 %v486
        %v526 = vunpack.c.l.b16 %v487
        %v527 = vunpack.c.l.b16 %v488
        %v528 = vunpack.c.l.b16 %v489
        %v529 = vunpack.c.l.b16 %v490
        %v530 = vunpack.c.l.b16 %v491
        %v531 = vpack.c.b16 %v516, %v515
        %v532 = vpack.c.b16 %v518, %v517
        %v533 = vpack.c.b16 %v520, %v519
        %v534 = vpack.c.b16 %v522, %v521
        %v535 = vpack.c.b16 %v524, %v523
        %v536 = vpack.c.b16 %v526, %v525
        %v537 = vpack.c.b16 %v528, %v527
        %v538 = vpack.c.b16 %v530, %v529
        %547 = vmatprep.subr.bf16.mxu0 0
        %548 = vmatpush1.bf16.msra.mxu0 %v538
        %549 = vmatprep.subr.bf16.mxu0 0
        %550 = vmatpush1.bf16.msra.mxu0 %v537
        %551 = vmatprep.subr.bf16.mxu0 0
        %552 = vmatpush1.bf16.msra.mxu0 %v536
        %553 = vmatprep.subr.bf16.mxu0 0
        %554 = vmatpush1.bf16.msra.mxu0 %v535
        %555 = vmatprep.subr.bf16.mxu0 0
        %556 = vmatpush1.bf16.msra.mxu0 %v534
        %557 = vmatprep.subr.bf16.mxu0 0
        %558 = vmatpush1.bf16.msra.mxu0 %v533
        %559 = vmatprep.subr.bf16.mxu0 0
        %560 = vmatpush1.bf16.msra.mxu0 %v532
        %561 = vmatprep.subr.bf16.mxu0 0
        %562 = vmatpush1.bf16.msra.mxu0 %v531
        %563 = vmatprep.subr.bf16.mxu0 0
        %564 = vmatpush2.bf16.msra.mxu0 0
        %565 = vmatprep.subr.bf16.mxu0 0
        %566 = vmatpush2.bf16.msra.mxu0 0
        %567 = vmatprep.subr.bf16.mxu0 0
        %568 = vmatpush2.bf16.msra.mxu0 0
        %569 = vmatprep.subr.bf16.mxu0 0
        %570 = vmatpush2.bf16.msra.mxu0 0
        %571 = vmatprep.subr.bf16.mxu0 0
        %572 = vmatpush2.bf16.msra.mxu0 0
        %573 = vmatprep.subr.bf16.mxu0 0
        %574 = vmatpush2.bf16.msra.mxu0 0
        %575 = vmatprep.subr.bf16.mxu0 0
        %576 = vmatpush2.bf16.msra.mxu0 0
        %577 = vmatprep.subr.bf16.mxu0 0
        %578 = vmatpush2.bf16.msra.mxu0 0
        %579 = vmatprep.mubr.bf16.mxu0 0
        %580 = vmatmul.mubr.bf16.gmra.mxu0 %v468
        %v581 = vpop.f32.mrf.mxu0
        %v582 = vadd.f32 %v497, %v581
        %v583 = vpop.f32.mrf.mxu0
        %v584 = vpop.f32.mrf.mxu0
        %v585 = vadd.f32 %v497, %v584
        %v586 = vpop.f32.mrf.mxu0
        %587 = vmatprep.mubr.bf16.mxu0 0
        %588 = vmatmul.mubr.bf16.gmra.mxu0 %v469
        %v589 = vpop.f32.mrf.mxu0
        %v590 = vadd.f32 %v497, %v589
        %v591 = vpop.f32.mrf.mxu0
        %v592 = vpop.f32.mrf.mxu0
        %v593 = vadd.f32 %v497, %v592
        %v594 = vpop.f32.mrf.mxu0
        %595 = vmatprep.mubr.bf16.mxu0 0
        %596 = vmatmul.mubr.bf16.gmra.mxu0 %v470
        %v597 = vpop.f32.mrf.mxu0
        %v598 = vadd.f32 %v497, %v597
        %v599 = vpop.f32.mrf.mxu0
        %v600 = vpop.f32.mrf.mxu0
        %v601 = vadd.f32 %v497, %v600
        %v602 = vpop.f32.mrf.mxu0
        %603 = vmatprep.mubr.bf16.mxu0 0
        %604 = vmatmul.mubr.bf16.gmra.mxu0 %v471
        %v605 = vpop.f32.mrf.mxu0
        %v606 = vadd.f32 %v497, %v605
        %v607 = vpop.f32.mrf.mxu0
        %v608 = vpop.f32.mrf.mxu0
        %v609 = vadd.f32 %v497, %v608
        %v610 = vpop.f32.mrf.mxu0
        %611 = vmatprep.mubr.bf16.mxu0 0
        %612 = vmatmul.mubr.bf16.gmra.mxu0 %v472
        %v613 = vpop.f32.mrf.mxu0
        %v614 = vadd.f32 %v497, %v613
        %v615 = vpop.f32.mrf.mxu0
        %v616 = vpop.f32.mrf.mxu0
        %v617 = vadd.f32 %v497, %v616
        %v618 = vpop.f32.mrf.mxu0
        %619 = vmatprep.mubr.bf16.mxu0 0
        %620 = vmatmul.mubr.bf16.gmra.mxu0 %v473
        %v621 = vpop.f32.mrf.mxu0
        %v622 = vadd.f32 %v497, %v621
        %v623 = vpop.f32.mrf.mxu0
        %v624 = vpop.f32.mrf.mxu0
        %v625 = vadd.f32 %v497, %v624
        %v626 = vpop.f32.mrf.mxu0
        %627 = vmatprep.mubr.bf16.mxu0 0
        %628 = vmatmul.mubr.bf16.gmra.mxu0 %v474
        %v629 = vpop.f32.mrf.mxu0
        %v630 = vadd.f32 %v497, %v629
        %v631 = vpop.f32.mrf.mxu0
        %v632 = vpop.f32.mrf.mxu0
        %v633 = vadd.f32 %v497, %v632
        %v634 = vpop.f32.mrf.mxu0
        %635 = vmatprep.mubr.bf16.mxu0 0
        %636 = vmatmul.mubr.bf16.gmra.mxu0 %v475
        %v637 = vpop.f32.mrf.mxu0
        %v638 = vadd.f32 %v497, %v637
        %v639 = vpop.f32.mrf.mxu0
        %v640 = vpop.f32.mrf.mxu0
        %v641 = vadd.f32 %v497, %v640
        %v642 = vpop.f32.mrf.mxu0
        %643 = vdwg.mxu0
        %644 = vst [vmem:[%s230] sm:$0xff] %v582
        %645 = vst [vmem:[%s230 + $0x8] sm:$0xff] %v585
        %646 = vst [vmem:[%s230 + $0x10] sm:$0xff] %v590
        %647 = vst [vmem:[%s230 + $0x18] sm:$0xff] %v593
        %648 = vst [vmem:[%s230 + $0x20] sm:$0xff] %v598
        %649 = vst [vmem:[%s230 + $0x28] sm:$0xff] %v601
        %650 = vst [vmem:[%s230 + $0x30] sm:$0xff] %v606
        %651 = vst [vmem:[%s230 + $0x38] sm:$0xff] %v609
        %652 = vst [vmem:[%s230 + $0x40] sm:$0xff] %v614
        %653 = vst [vmem:[%s230 + $0x48] sm:$0xff] %v617
        %654 = vst [vmem:[%s230 + $0x50] sm:$0xff] %v622
        %655 = vst [vmem:[%s230 + $0x58] sm:$0xff] %v625
        %656 = vst [vmem:[%s230 + $0x60] sm:$0xff] %v630
        %657 = vst [vmem:[%s230 + $0x68] sm:$0xff] %v633
        %658 = vst [vmem:[%s230 + $0x70] sm:$0xff] %v638
        %659 = vst [vmem:[%s230 + $0x78] sm:$0xff] %v641
        %s660 = sand.u32 %s137, 1
        %s661 = scalar_lea.sflag [#allocation3], %s660
        %s662 = sand.u32 %s137, 1
        %s663 = smul.addr %s662, 128
        %s664 = scalar_lea.vmem [#allocation2], %s663
        // Predicated region
        $region41: #{tpu_custom_call.1} parent=39 // pred_check
          %p665 = pneg %p147
        $region42: #{tpu_custom_call.1} parent=39 // pred_check_branch
          %667 = sbr.rel (%p665) target = $region44
        $region43: #{tpu_custom_call.1} parent=39 // pred_region
          %s668 = smul.u32 16, %s19
          %s669 = ssub.s32 25, %s668
          %p670 = scmp.lt.s32.totalorder %s669, 16
          %s671 = scalar_select %p670, %s669, 16
          %s672 = smul.u32 128, %s671
          %s674 = ssub.s32 2048, %s672
          %675 = vsyncadd %s661, %s674
          %p676 = scmp.ne.s32.totalorder 0, %s672
          %s677 = smul.addr %s668, 128
          %s678 = scalar_lea.hbm %s5, %s677
          %s679 = smul.u32 8, %s671
          %s680 = sshll.u32 %s664, 4
          %s681 = int_to_ptr.vmem [resolvable:$true] %s680
          %s682 = sshll.u32 %s679, 4
          %686 = dma.vmem_to_hbm [thread:$0]  (%p676), %s681, %s682, %s678, %s661, 128, 128, 8
        $region44: #{tpu_custom_call.1} parent=39 // pred_fallthru
          _
      $region40: #{tpu_custom_call.1} parent=5 // pred_fallthru
        _
      %p687 = scmp.le.s32.totalorder 2, %s14
      // Predicated region
      $region45: #{tpu_custom_call.1} parent=5 // pred_check
        %p688 = pneg %p687
      $region46: #{tpu_custom_call.1} parent=5 // pred_check_branch
        %690 = sbr.rel (%p688) target = $region48
      $region47: #{tpu_custom_call.1} parent=5 // pred_region
        %s691 = ssub.s32 %s14, 2
        // Predicated region
        $region49: #{tpu_custom_call.1} parent=47 // pred_check
          %p692 = pneg %p153
        $region50: #{tpu_custom_call.1} parent=47 // pred_check_branch
          %694 = sbr.rel (%p692) target = $region52
        $region51: #{tpu_custom_call.1} parent=47 // pred_region
          %s695 = sand.u32 %s138, 1
          %s696 = scalar_lea.sflag [#allocation3], %s695
          %s697 = sand.u32 %s138, 1
          %s698 = smul.addr %s697, 128
          %s699 = scalar_lea.vmem [#allocation2], %s698
          %700 = dma.done %s696, 2048
        $region52: #{tpu_custom_call.1} parent=47 // pred_fallthru
          _
      $region48: #{tpu_custom_call.1} parent=5 // pred_fallthru
        _
    $region6: #{tpu_custom_call.1} parent=1 // loop_footer
      %s18 = sadd.s32 1, %s14
    $region7: #{tpu_custom_call.1} parent=1 // loop_footer_branch
      %13 = sbr.rel target = $region3
    $region8: #{tpu_custom_call.1} parent=1 // loop_exit
      _
    %701 = vsyncpa [#allocation3], 1
    %s702 = scalar_lea.sflag [#allocation3], 1
    %703 = vsyncpa %s702, 1

</llo_original>
